<compile_context>
chip_gen: v7x
topology: tpu7x:2x2x1
jax: 0.10.0
libtpu: 0.0.40
codegen_flags: <defaults>
</compile_context>

<pallas_src>
import jax
import jax.numpy as jnp
from jax.experimental import pallas as pl
from jax.experimental.pallas import tpu as pltpu


_LANE = 128
# Per-buffer tile budget. With BlockSpec double-buffering of one input and one
# output the peak VMEM is ~4x this (= 8 MiB): safely under every generation's
# default scoped-VMEM limit. Copies already run at ~85% of HBM roofline with
# >= 1 MiB tiles, so larger tiles buy nothing.
_PER_BUF_BUDGET = 2 * 1024 * 1024
# Below this total size a kernel launch costs more than the data it moves; the
# flatten is a metadata-only reshape, so just return it.
_KERNEL_MIN_BYTES = 1 * 1024 * 1024
# Above this total size, split the row axis so the "parallel" grid dimension
# can be sharded across both v7x TensorCores.
_MULTI_CORE_MIN_BYTES = 4 * 1024 * 1024


class Lambda:
    """JAX/Pallas equivalent of the PyTorch Lambda module: __call__(x) = func(x)."""

    def __init__(self, func):
        self.func = func

    def __call__(self, x):
        return self.func(x)


def _sublane_pack(dtype):
    """Sublane pack factor: 8 for 32-bit, 16 for 16-bit, 32 for 8-bit dtypes."""
    bits = jnp.dtype(dtype).itemsize * 8
    return 8 * max(1, 32 // bits)


def _largest_dividing_multiple(dim, unit, cap):
    """Largest t = k*unit with t <= cap and dim % t == 0, else None."""
    t = (min(cap, dim) // unit) * unit
    while t >= unit:
        if dim % t == 0:
            return t
        t -= unit
    return None


def _copy_kernel(x_ref, o_ref):
    # x_ref / o_ref: identical (tb, tn) VMEM tiles.
    o_ref[...] = x_ref[...]


def _pallas_copy_2d(x2):
    """Tiled, lane-/sublane-dense identity copy of a 2-D array via Pallas."""
    R, C = x2.shape
    itemsize = jnp.dtype(x2.dtype).itemsize
    total_bytes = R * C * itemsize
    sub = _sublane_pack(x2.dtype)

    # --- column (lane) tile: full width if cheap, else a multiple of 128 ---
    if C * itemsize * sub <= _PER_BUF_BUDGET:
        tn = C  # full width is always a legal block
    else:
        cap = max(_LANE, (_PER_BUF_BUDGET // (sub * itemsize)) // _LANE * _LANE)
        # Prefer a tile that divides C (no ragged edge); ragged edge is legal
        # (Pallas masks it) if no divisor exists.
        tn = _largest_dividing_multiple(C, _LANE, cap) or cap
    tn = min(tn, C) if tn < C else C

    # --- row (sublane) tile: full batch if it fits, else a multiple of `sub` ---
    max_rows = max(1, _PER_BUF_BUDGET // (tn * itemsize))
    if R <= max_rows:
        tb = R
    else:
        cap = max(sub, (max_rows // sub) * sub)
        tb = _largest_dividing_multiple(R, sub, cap) or cap
    if tb >= R:
        tb = R  # never emit a block taller than the array

    # v7x megacore: if the array is big but still a single row block, split the
    # rows so the leading "parallel" grid axis can shard across 2 TensorCores.
    if total_bytes >= _MULTI_CORE_MIN_BYTES and tb == R and R >= 2 * sub:
        tb = _largest_dividing_multiple(R, sub, R // 2) or tb

    grid = (pl.cdiv(R, tb), pl.cdiv(C, tn))

    return pl.pallas_call(
        _copy_kernel,
        out_shape=jax.ShapeDtypeStruct((R, C), x2.dtype),
        grid=grid,
        in_specs=[pl.BlockSpec((tb, tn), lambda i, j: (i, j))],
        out_specs=pl.BlockSpec((tb, tn), lambda i, j: (i, j)),
        input_output_aliases={0: 0},
        cost_estimate=pl.CostEstimate(
            flops=0, transcendentals=0, bytes_accessed=2 * total_bytes),
        compiler_params=pltpu.CompilerParams(
            dimension_semantics=("parallel", "parallel")),
    )(x2)


def pallas_flatten(x, *, use_kernel=None):
    """Lambda func: x.view(x.size(0), -1).

    Default: metadata-only reshape (zero bytes moved).  When `use_kernel=True`
    (or the array is large), the flatten is realized as an explicit tiled
    Pallas copy (fusion target / explicit materialization).
    """
    B = x.shape[0]
    N = 1
    for d in x.shape[1:]:
        N *= d
    x2 = x.reshape(B, N)  # contiguous NCHW flatten -> metadata-only

    itemsize = jnp.dtype(x.dtype).itemsize
    total = B * N
    total_bytes = total * itemsize
    if use_kernel is None:
        use_kernel = total_bytes >= _KERNEL_MIN_BYTES
    if not use_kernel:
        return x2

    # Lane-dense re-factorization: if N is not a multiple of 128 but the flat
    # buffer is, copy through a (rows2, cols2) view with cols2 a multiple of 128
    # (free wrapper-side reshapes; avoids masked partial stores).
    work = x2
    refactored = False
    if N % _LANE != 0 and total % _LANE == 0:
        cols2 = _largest_dividing_multiple(
            total, _LANE, max(_LANE, _PER_BUF_BUDGET // itemsize))
        if cols2:
            work = x2.reshape(total // cols2, cols2)
            refactored = True

    out = _pallas_copy_2d(work)
    if refactored:
        out = out.reshape(B, N)
    return out


# TODO(synk): Lambda wraps an arbitrary Python callable; only the tutorial's
# concrete flatten lambda is given a Pallas implementation here. Other funcs can
# be passed to Lambda(...) as plain JAX callables unchanged.


if __name__ == "__main__":
    key = jax.random.PRNGKey(0)
    x = jax.random.normal(key, (2, 4, 16, 16), dtype=jnp.float32)  # NCHW

    ref = x.reshape(x.shape[0], -1)

    # Module under test: Lambda(lambda x: x.view(x.size(0), -1))
    flatten = Lambda(pallas_flatten)

    # Default path: tiny array -> pure metadata-only reshape (no kernel launch).
    y_default = jax.block_until_ready(flatten(x))
    assert y_default.shape == (2, 4 * 16 * 16), y_default.shape
    assert jnp.array_equal(y_default, ref)

    # Explicit Pallas path, forced so the kernel is compiled and exercised.
    y_kernel = jax.block_until_ready(pallas_flatten(x, use_kernel=True))
    assert y_kernel.shape == (2, 4 * 16 * 16), y_kernel.shape
    assert y_kernel.dtype == x.dtype
    assert jnp.array_equal(y_kernel, ref)

    print("KERNEL_OK")
</pallas_src>

<mosaic_0001>
module attributes {stable_mosaic.version = 11 : i64} {
  func.func @_copy_kernel(%arg0: i32, %arg1: i32, %arg2: memref<2x1024xf32, #tpu.memory_space<vmem>>, %arg3: memref<2x1024xf32, #tpu.memory_space<vmem>>) attributes {dimension_semantics = [#tpu.dimension_semantics<parallel>, #tpu.dimension_semantics<parallel>], iteration_bounds = array<i64: 1, 1>, scalar_prefetch = 0 : i64, scratch_operands = 0 : i64, tpu.core_type = #tpu.core_type<tc>, window_params = [{transform_indices = @transform_0, window_bounds = array<i64: 2, 1024>}, {transform_indices = @transform_1, window_bounds = array<i64: 2, 1024>}]} {
    %c0 = arith.constant 0 : index
    %c0_0 = arith.constant 0 : index
    %0 = vector.load %arg2[%c0, %c0_0] : memref<2x1024xf32, #tpu.memory_space<vmem>>, vector<2x1024xf32>
    %c0_1 = arith.constant 0 : index
    %c0_2 = arith.constant 0 : index
    %1 = vector.load %arg3[%c0_1, %c0_2] : memref<2x1024xf32, #tpu.memory_space<vmem>>, vector<2x1024xf32>
    tpu.vector_store %arg3[%c0_1, %c0_2], %0 {strides = array<i32>} : memref<2x1024xf32, #tpu.memory_space<vmem>>, vector<2x1024xf32>,
    return
  }
  func.func @transform_0(%arg0: i32, %arg1: i32) -> (i32, i32) {
    %c0_i32 = arith.constant 0 : i32
    return %arg0, %arg1 : i32, i32
  }
  func.func @transform_1(%arg0: i32, %arg1: i32) -> (i32, i32) {
    %c0_i32 = arith.constant 0 : i32
    return %arg0, %arg1 : i32, i32
  }
}

</mosaic_0001>

<llo_original>
// kernel: tpu_custom_call.1
$region0: #{tpu_custom_call.1}
  #allocation0 [shape = 'u32[]', space=smem, size = 0x4, offset = 0x4, fixed_abs, tag = 'smem constant byte address 0x4 - core index']
  #allocation1 [shape = 'u32[144,128]{1,0:T(1,128)}', space=vmem, size = 0x12000, scoped, tag = 'internal scratch']
  %s0 = inlined_call_operand.hbm [shape: f32[2,1024], index: 0, kind: input, shape index: {}, may-alias: {0,1}]
  %s1 = inlined_call_operand.hbm [shape: f32[2,1024], index: 1, kind: output, shape index: {}, may-alias: {0,1}]
  %s2 = sld [smem:[#allocation0]]
  $region18: #{tpu_custom_call.1} parent=0
    _
  %s4 = ssub.s32 1, %s2
  %s5 = scalar_select 0, %s4, %s2
  $region1: #{tpu_custom_call.1} parent=0
    #allocation2 [shape = 'u8[8192]{0}', space=vmem, size = 0x2000, scoped, tag = 'input window, operand 0, single buffered']
    #allocation3 [shape = 's32[1]{0}', space=sflag, size = 0x4, scoped, tag = 'scoped memory for tpu_custom_call.1']
    #allocation4 [shape = 's32[1]{0}', space=sflag, size = 0x4, scoped, tag = 'scoped memory for tpu_custom_call.1']
    #allocation5 [shape = 'u8[8192]{0}', space=vmem, size = 0x2000, scoped, tag = 'output window, operand 0, single buffered']
    %6 = vsyncpa [#allocation3], 0
    %7 = vsyncpa [#allocation4], 0
    // Predicated region
    $region2: #{tpu_custom_call.1} parent=1 // pred_check
      _
    $region3: #{tpu_custom_call.1} parent=1 // pred_check_branch
      %9 = sbr.rel (0) target = $region5
    $region4: #{tpu_custom_call.1} parent=1 // pred_region
      %s11 = ssub.s32 256, 256
      %12 = vsyncadd [#allocation3], %s11
      %s14 = sshll.u32 [#allocation2], 4
      %s15 = int_to_ptr.vmem [resolvable:$true] %s14
      %17 = dma.hbm_to_vmem [thread:$0]  %s0, 256, %s15, [#allocation3]
    $region5: #{tpu_custom_call.1} parent=1 // pred_fallthru
      _
    // Predicated region
    $region6: #{tpu_custom_call.1} parent=1 // pred_check
      _
    $region7: #{tpu_custom_call.1} parent=1 // pred_check_branch
      %19 = sbr.rel (0) target = $region9
    $region8: #{tpu_custom_call.1} parent=1 // pred_region
      %20 = dma.done [#allocation3], 256
    $region9: #{tpu_custom_call.1} parent=1 // pred_fallthru
      _
    %v21 = vld [vmem:[#allocation2] sm:$0xff]
    %v22 = vld [vmem:[#allocation2 + $0x8] sm:$0xff]
    %23 = vst [vmem:[#allocation5] sm:$0xff] %v21
    %24 = vst [vmem:[#allocation5 + $0x8] sm:$0xff] %v22
    // Predicated region
    $region10: #{tpu_custom_call.1} parent=1 // pred_check
      _
    $region11: #{tpu_custom_call.1} parent=1 // pred_check_branch
      %26 = sbr.rel (0) target = $region13
    $region12: #{tpu_custom_call.1} parent=1 // pred_region
      %s28 = ssub.s32 256, 256
      %29 = vsyncadd [#allocation4], %s28
      %s31 = sshll.u32 [#allocation5], 4
      %s32 = int_to_ptr.vmem [resolvable:$true] %s31
      %34 = dma.vmem_to_hbm [thread:$0]  %s32, 256, %s1, [#allocation4]
    $region13: #{tpu_custom_call.1} parent=1 // pred_fallthru
      _
    // Predicated region
    $region14: #{tpu_custom_call.1} parent=1 // pred_check
      _
    $region15: #{tpu_custom_call.1} parent=1 // pred_check_branch
      %36 = sbr.rel (0) target = $region17
    $region16: #{tpu_custom_call.1} parent=1 // pred_region
      %37 = dma.done [#allocation4], 256
    $region17: #{tpu_custom_call.1} parent=1 // pred_fallthru
      _
    %38 = vsyncpa [#allocation3], 1
    %39 = vsyncpa [#allocation4], 1

</llo_original>
